<compile_context>
chip_gen: v7x
topology: tpu7x:2x2x1
jax: 0.10.0
libtpu: 0.0.40
codegen_flags: <defaults>
</compile_context>

<pallas_src>
import jax
import jax.numpy as jnp
from jax.experimental import pallas as pl
from jax.experimental.pallas import tpu as pltpu

_HI = jax.lax.Precision.HIGHEST


# ----------------------------------------------------------------------------
# Pallas kernel:  Y[n] = M @ X[n] + B    (lane-dense, NCHW-native)
# ----------------------------------------------------------------------------
def _affine_kernel(x_ref, m_ref, b_ref, o_ref):
    # x_ref: (1, C, TL)   m_ref: (R, C)   b_ref: (R, 1)   o_ref: (1, R, TL)
    acc = jnp.dot(m_ref[...], x_ref[0], preferred_element_type=jnp.float32)
    o_ref[0] = (acc + b_ref[...]).astype(o_ref.dtype)


def _pick_lane_tile(L, cap=2048):
    """Largest multiple of 128 that divides L, capped; else the full extent."""
    if L <= cap or L % 128 != 0:
        return L
    t = cap
    while L % t != 0:
        t -= 128
    return t


def affine_pointwise(x_ncl, M, B):
    """x_ncl: (N, C, L).  M: (R, C).  B: (R,).  Returns (N, R, L) = M @ x + B per batch."""
    N, C, L = x_ncl.shape
    R = M.shape[0]
    TL = _pick_lane_tile(L)
    return pl.pallas_call(
        _affine_kernel,
        out_shape=jax.ShapeDtypeStruct((N, R, L), x_ncl.dtype),
        grid=(N, L // TL),
        in_specs=[
            pl.BlockSpec((1, C, TL), lambda n, l: (n, 0, l)),
            pl.BlockSpec((R, C), lambda n, l: (0, 0)),
            pl.BlockSpec((R, 1), lambda n, l: (0, 0)),
        ],
        out_specs=pl.BlockSpec((1, R, TL), lambda n, l: (n, 0, l)),
        compiler_params=pltpu.CompilerParams(
            dimension_semantics=("parallel", "parallel")),
    )(x_ncl, M, B.reshape(R, 1))


# ----------------------------------------------------------------------------
# Affine-map composition (done once at init on the tiny weight tensors).
# A map (M, B) with M:(Co, S, S, Ci), B:(Co, S, S) means: for every input pixel
# with channel vector x (Ci,), the output block is
#     out[co, dh, dw] = sum_ci M[co, dh, dw, ci] * x[ci] + B[co, dh, dw]
# placed at final position (S*h + dh, S*w + dw).
# ----------------------------------------------------------------------------
def _identity_map(C):
    M = jnp.eye(C, dtype=jnp.float32).reshape(C, 1, 1, C)
    B = jnp.zeros((C, 1, 1), dtype=jnp.float32)
    return M, B


def _compose_convT(mp, w, b):
    """ConvTranspose2d(k=2, s=2).  w: (Cin, Cout, 2, 2), b: (Cout,)."""
    M, B = mp
    S, Ci = M.shape[1], M.shape[-1]
    Cout = w.shape[1]
    Mn = jnp.einsum("cokl,cabi->oakbli", w, M, precision=_HI)
    Mn = Mn.reshape(Cout, 2 * S, 2 * S, Ci)
    Bn = jnp.einsum("cokl,cab->oakbl", w, B, precision=_HI)
    Bn = Bn.reshape(Cout, 2 * S, 2 * S) + b[:, None, None]
    return Mn, Bn


def _compose_conv1x1(mp, v, bv):
    """Conv2d(k=1).  v: (Cout, Cin) (already squeezed), bv: (Cout,)."""
    M, B = mp
    Mn = jnp.einsum("oc,cabi->oabi", v, M, precision=_HI)
    Bn = jnp.einsum("oc,cab->oab", v, B, precision=_HI) + bv[:, None, None]
    return Mn, Bn


def _flatten_map(mp):
    M, B = mp
    Co, S, _, Ci = M.shape
    return M.reshape(Co * S * S, Ci), B.reshape(Co * S * S), S


# ----------------------------------------------------------------------------
# Deterministic parameter init (synthetic weights; PyTorch layouts)
# ----------------------------------------------------------------------------
def _init_conv1x1(key, cin, cout):
    k1, k2 = jax.random.split(key)
    w = jax.random.normal(k1, (cout, cin, 1, 1), jnp.float32) * 0.1
    b = jax.random.normal(k2, (cout,), jnp.float32) * 0.1
    return w, b


def _init_convT(key, cin, cout):
    k1, k2 = jax.random.split(key)
    w = jax.random.normal(k1, (cin, cout, 2, 2), jnp.float32) * 0.1
    b = jax.random.normal(k2, (cout,), jnp.float32) * 0.1
    return w, b


# ----------------------------------------------------------------------------
# OutLayer module (deep_supervision modes 0/1/2/3)
# ----------------------------------------------------------------------------
class OutLayerPallas:
    def __init__(self, in_channels, out_channel=1, deep_supervision=0, key=None):
        self.deep_supervision = deep_supervision
        self.in_channels = list(in_channels)
        self.out_channel = out_channel
        key = jax.random.PRNGKey(0) if key is None else key
        self.params = {}

        if deep_supervision == 0:
            key, k = jax.random.split(key)
            self.params["out_layer"] = _init_conv1x1(k, in_channels[0], out_channel)
        elif deep_supervision == 1:
            for i in range(len(in_channels)):
                key, k = jax.random.split(key)
                self.params[f"out_layer{i}"] = _init_conv1x1(k, in_channels[i], out_channel)
        elif deep_supervision in (2, 3):
            for i in range(1, len(in_channels)):
                layers = []
                for ii in range(i, 0, -1):
                    key, k = jax.random.split(key)
                    layers.append(_init_convT(k, in_channels[ii], in_channels[ii - 1]))
                self.params[f"interloss_up{i}"] = layers
            if deep_supervision == 2:
                for i in range(len(in_channels)):
                    key, k = jax.random.split(key)
                    self.params[f"out_layer{i}"] = _init_conv1x1(k, in_channels[0], out_channel)
            else:  # deep_supervision == 3
                key, k = jax.random.split(key)
                self.params["out_layer"] = _init_conv1x1(
                    k, in_channels[0] * len(in_channels), out_channel)

        # Pre-compose every branch into a single (M, B) affine map.
        self.plan = self._build_plan()

    def _chain_map(self, lvl):
        mp = _identity_map(self.in_channels[lvl])
        for (w, b) in self.params[f"interloss_up{lvl}"]:
            mp = _compose_convT(mp, w, b)
        return mp

    def _build_plan(self):
        """plan = list of outputs; each output = list of terms (y_index, M, B, S)."""
        ds = self.deep_supervision
        C0 = self.in_channels[0]
        plan = []
        if ds == 0:
            w, b = self.params["out_layer"]
            mp = _compose_conv1x1(_identity_map(C0), w[:, :, 0, 0], b)
            plan.append([(3,) + _flatten_map(mp)])          # y[3] == y0
        elif ds == 1:
            for j in range(4):                               # y[j] == y_{3-j}
                lvl = 3 - j
                w, b = self.params[f"out_layer{lvl}"]
                mp = _compose_conv1x1(_identity_map(self.in_channels[lvl]),
                                      w[:, :, 0, 0], b)
                plan.append([(j,) + _flatten_map(mp)])
        elif ds == 2:
            for j in range(4):
                lvl = 3 - j
                w, b = self.params[f"out_layer{lvl}"]
                mp = self._chain_map(lvl) if lvl >= 1 else _identity_map(C0)
                mp = _compose_conv1x1(mp, w[:, :, 0, 0], b)
                plan.append([(j,) + _flatten_map(mp)])
        else:  # ds == 3: split the concat-conv weight and fuse each slice per branch
            w, b = self.params["out_layer"]
            V = w[:, :, 0, 0]                                # (out, 4*C0)
            terms = []
            for j in range(4):                               # concat order: y3u,y2u,y1u,y0
                lvl = 3 - j
                Vj = V[:, j * C0:(j + 1) * C0]
                bj = b if lvl == 0 else jnp.zeros_like(b)    # bias added exactly once
                mp = self._chain_map(lvl) if lvl >= 1 else _identity_map(C0)
                mp = _compose_conv1x1(mp, Vj, bj)
                terms.append((j,) + _flatten_map(mp))
            plan.append(terms)
        return plan

    def forward(self, y):
        outs = []
        for terms in self.plan:
            acc = None
            for (j, M, Bv, S) in terms:
                x = y[j]
                N, C, H, W = x.shape
                r = affine_pointwise(x.reshape(N, C, H * W), M, Bv)   # (N, Co*S*S, H*W)
                Co = M.shape[0] // (S * S)
                r = r.reshape(N, Co, S, S, H, W)
                r = jnp.transpose(r, (0, 1, 4, 2, 5, 3)).reshape(N, Co, S * H, S * W)
                acc = r if acc is None else acc + r
            outs.append(acc)
        return outs

    __call__ = forward


# ----------------------------------------------------------------------------
# Pure-JAX references (mirror the PyTorch layer-by-layer structure)
# ----------------------------------------------------------------------------
def conv1x1_ref(x, w, b):
    return jnp.einsum("nchw,oc->nohw", x, w[:, :, 0, 0],
                      precision=_HI) + b[None, :, None, None]


def convtranspose2x2_ref(x, w, b):
    y = jnp.einsum("nchw,cokl->nohkwl", x, w, precision=_HI)
    N, O, H, _, W, _ = y.shape
    return y.reshape(N, O, 2 * H, 2 * W) + b[None, :, None, None]


def reference_forward(mod, y):
    ds = mod.deep_supervision
    p = mod.params
    y3, y2, y1, y0 = y
    if ds == 0:
        w, b = p["out_layer"]
        return [conv1x1_ref(y0, w, b)]
    if ds == 1:
        names = ["out_layer3", "out_layer2", "out_layer1", "out_layer0"]
        return [conv1x1_ref(f, *p[n]) for n, f in zip(names, [y3, y2, y1, y0])]

    def up(i, x):
        for (w, b) in p[f"interloss_up{i}"]:
            x = convtranspose2x2_ref(x, w, b)
        return x

    y3u, y2u, y1u = up(3, y3), up(2, y2), up(1, y1)
    if ds == 2:
        names = ["out_layer3", "out_layer2", "out_layer1", "out_layer0"]
        return [conv1x1_ref(f, *p[n]) for n, f in zip(names, [y3u, y2u, y1u, y0])]
    w, b = p["out_layer"]
    cat = jnp.concatenate([y3u, y2u, y1u, y0], axis=1)
    return [conv1x1_ref(cat, w, b)]


# ----------------------------------------------------------------------------
if __name__ == "__main__":
    key = jax.random.PRNGKey(0)
    batch = 2
    in_channels = [4, 8, 16, 32]     # channels of y0, y1, y2, y3
    H0 = W0 = 16
    out_channel = 1

    # y = [y3, y2, y1, y0] with spatial H0 / 2^i for feature y_i (NCHW)
    ks = jax.random.split(key, 4)
    y0 = jax.random.normal(ks[0], (batch, in_channels[0], H0, W0), jnp.float32)
    y1 = jax.random.normal(ks[1], (batch, in_channels[1], H0 // 2, W0 // 2), jnp.float32)
    y2 = jax.random.normal(ks[2], (batch, in_channels[2], H0 // 4, W0 // 4), jnp.float32)
    y3 = jax.random.normal(ks[3], (batch, in_channels[3], H0 // 8, W0 // 8), jnp.float32)
    y = [y3, y2, y1, y0]

    all_ok = True
    for ds in (0, 1, 2, 3):
        mod = OutLayerPallas(in_channels, out_channel, deep_supervision=ds,
                             key=jax.random.PRNGKey(42))
        outs = mod(y)
        outs = [jax.block_until_ready(o) for o in outs]
        refs = reference_forward(mod, y)
        for o, r in zip(outs, refs):
            if o.shape != r.shape or not jnp.allclose(o, r, atol=5e-4, rtol=5e-4):
                all_ok = False
                err = float(jnp.max(jnp.abs(o - r))) if o.shape == r.shape else float("nan")
                print(f"MISMATCH in deep_supervision={ds}: {o.shape} vs {r.shape}, max_err={err}")

    if all_ok:
        print("KERNEL_OK")
</pallas_src>

<mosaic_0001>
module attributes {stable_mosaic.version = 11 : i64} {
  func.func @_affine_kernel(%arg0: i32, %arg1: i32, %arg2: memref<1x4x256xf32, #tpu.memory_space<vmem>>, %arg3: memref<1x4xf32, #tpu.memory_space<vmem>>, %arg4: memref<1x1xf32, #tpu.memory_space<vmem>>, %arg5: memref<1x1x256xf32, #tpu.memory_space<vmem>>) attributes {dimension_semantics = [#tpu.dimension_semantics<parallel>, #tpu.dimension_semantics<parallel>], iteration_bounds = array<i64: 2, 1>, scalar_prefetch = 0 : i64, scratch_operands = 0 : i64, tpu.core_type = #tpu.core_type<tc>, window_params = [{transform_indices = @transform_0, window_bounds = array<i64: 1, 4, 256>}, {pipeline_mode = #tpu.pipeline_mode<synchronous>, transform_indices = @transform_1, window_bounds = array<i64: 1, 4>}, {pipeline_mode = #tpu.pipeline_mode<synchronous>, transform_indices = @transform_2, window_bounds = array<i64: 1, 1>}, {transform_indices = @transform_3, window_bounds = array<i64: 1, 1, 256>}]} {
    %c0 = arith.constant 0 : index
    %c0_0 = arith.constant 0 : index
    %0 = vector.load %arg3[%c0, %c0_0] : memref<1x4xf32, #tpu.memory_space<vmem>>, vector<1x4xf32>
    %c0_1 = arith.constant 0 : index
    %c0_2 = arith.constant 0 : index
    %c0_3 = arith.constant 0 : index
    %1 = vector.load %arg2[%c0_1, %c0_2, %c0_3] : memref<1x4x256xf32, #tpu.memory_space<vmem>>, vector<1x4x256xf32>
    %2 = vector.shape_cast %1 : vector<1x4x256xf32> to vector<4x256xf32>
    %cst = arith.constant dense<0.000000e+00> : vector<1x256xf32>
    %3 = tpu.matmul %0, %2, %cst {dimension_numbers = #tpu.dot_dimension_numbers<[1], [0], [0], [1], [0, 0, 1, 1], [], []>} : vector<1x4xf32>, vector<4x256xf32>, vector<1x256xf32> -> vector<1x256xf32>
    %c0_4 = arith.constant 0 : index
    %c0_5 = arith.constant 0 : index
    %4 = vector.load %arg4[%c0_4, %c0_5] : memref<1x1xf32, #tpu.memory_space<vmem>>, vector<1x1xf32>
    %5 = vector.broadcast %4 : vector<1x1xf32> to vector<1x256xf32>
    %6 = arith.addf %3, %5 : vector<1x256xf32>
    %c0_6 = arith.constant 0 : index
    %c0_7 = arith.constant 0 : index
    %c0_8 = arith.constant 0 : index
    %7 = vector.load %arg5[%c0_6, %c0_7, %c0_8] : memref<1x1x256xf32, #tpu.memory_space<vmem>>, vector<1x1x256xf32>
    %8 = vector.shape_cast %7 : vector<1x1x256xf32> to vector<1x256xf32>
    %9 = vector.shape_cast %6 : vector<1x256xf32> to vector<1x1x256xf32>
    tpu.vector_store %arg5[%c0_6, %c0_7, %c0_8], %9 {strides = array<i32>} : memref<1x1x256xf32, #tpu.memory_space<vmem>>, vector<1x1x256xf32>,
    return
  }
  func.func @transform_0(%arg0: i32, %arg1: i32) -> (i32, i32, i32) {
    %c0_i32 = arith.constant 0 : i32
    %c0_i32_0 = arith.constant 0 : i32
    return %arg0, %c0_i32, %arg1 : i32, i32, i32
  }
  func.func @transform_1(%arg0: i32, %arg1: i32) -> (i32, i32) {
    %c0_i32 = arith.constant 0 : i32
    %c0_i32_0 = arith.constant 0 : i32
    %c0_i32_1 = arith.constant 0 : i32
    return %c0_i32, %c0_i32_0 : i32, i32
  }
  func.func @transform_2(%arg0: i32, %arg1: i32) -> (i32, i32) {
    %c0_i32 = arith.constant 0 : i32
    %c0_i32_0 = arith.constant 0 : i32
    %c0_i32_1 = arith.constant 0 : i32
    return %c0_i32, %c0_i32_0 : i32, i32
  }
  func.func @transform_3(%arg0: i32, %arg1: i32) -> (i32, i32, i32) {
    %c0_i32 = arith.constant 0 : i32
    %c0_i32_0 = arith.constant 0 : i32
    return %arg0, %c0_i32, %arg1 : i32, i32, i32
  }
}

</mosaic_0001>

<llo_original>
// kernel: tpu_custom_call.1
$region0: #{tpu_custom_call.1}
  #allocation0 [shape = 'u32[]', space=smem, size = 0x4, offset = 0x4, fixed_abs, tag = 'smem constant byte address 0x4 - core index']
  #allocation1 [shape = 'u32[144,128]{1,0:T(1,128)}', space=vmem, size = 0x12000, scoped, tag = 'internal scratch']
  #allocation2 [shape = 'f32[1,1]{1,0:T(1,128)S(1)}', space=vmem, size = 0x200, scoped, tag = 'scoped memory for tpu_custom_call.1']
  %s0 = inlined_call_operand.hbm [shape: f32[2,4,256], index: 0, kind: input, shape index: {}]
  %s1 = inlined_call_operand.vmem [shape: f32[1,4], index: 1, kind: input, shape index: {}]
  %s2 = inlined_call_operand.<no memory space> [shape: f32[1,1], index: 2, kind: input, shape index: {}]
  %s3 = inlined_call_operand.hbm [shape: f32[2,1,256], index: 3, kind: output, shape index: {}]
  %s4 = sld [smem:[#allocation0]]
  $region49: #{tpu_custom_call.1} parent=0
    _
  %s6 = ssub.s32 1, %s4
  %s7 = scalar_select 0, %s6, %s4
  %v8 = vstv %s2
  %9 = vst [vmem:[#allocation2] sm:$0x1] %v8
  $region1: #{tpu_custom_call.1} parent=0
    #allocation3 [shape = 'u8[8192]{0}', space=vmem, size = 0x2000, scoped, tag = 'input window, operand 0']
    #allocation4 [shape = 's32[2]{0}', space=sflag, size = 0x8, scoped, tag = 'scoped memory for tpu_custom_call.1']
    #allocation5 [shape = 's32[2]{0}', space=sflag, size = 0x8, scoped, tag = 'scoped memory for tpu_custom_call.1']
    #allocation6 [shape = 'u8[2048]{0}', space=vmem, size = 0x800, scoped, tag = 'output window, operand 0']
    %10 = vsyncpa [#allocation4], 0
    %s11 = scalar_lea.sflag [#allocation4], 1
    %12 = vsyncpa %s11, 0
    %13 = vsyncpa [#allocation5], 0
    %s14 = scalar_lea.sflag [#allocation5], 1
    %15 = vsyncpa %s14, 0
    loop: start=0, step=1, limit=4
    $region2: #{tpu_custom_call.1} parent=1 // loop_pre_header
      _
    $region3: #{tpu_custom_call.1} parent=1 // loop_header
      %s17 = sphi 0, %s21
      %p18 = scmp.ge.s32.totalorder %s17, 4
      %s24 = sphi 0, %s36
      %s25 = sphi 0, %s32
      %s26 = sphi 0, %s24
      %s27 = sphi 0, %s25
      %s28 = sphi 0, %s26
      %s29 = sphi 0, %s27
      %s41 = sphi 0, %s43
      %s44 = sphi 0, %s41
      %s45 = sphi 0, %s44
      %s61 = sphi 0, %s45
      %s65 = sphi 0, %s65
      %s67 = sphi 0, %s65
      %s68 = sphi 0, %s67
      %s82 = sphi 0, %s68
      %s86 = sphi 0, %s86
      %s88 = sphi 0, %s86
      %s89 = sphi 0, %s88
      %s103 = sphi 0, %s89
      %s111 = sphi 0, %s113
      %s114 = sphi 0, %s111
      %s115 = sphi 0, %s114
      %s131 = sphi 0, %s115
    $region4: #{tpu_custom_call.1} parent=1 // loop_header_branch
      %20 = sbr.rel (%p18) target = $region8
    $region5: #{tpu_custom_call.1} parent=1 // loop_body
      %s22 = ssub.s32 %s17, 1
      %s23 = ssub.s32 %s17, 2
      %s30 = sadd.s32 1, %s25
      %p31 = scmp.ge.s32.totalorder %s30, 1
      %s32 = scalar_select %p31, 0, %s30
      %s33 = sadd.s32 1, %s24
      %s34 = scalar_select %p31, %s33, %s24
      %p35 = scmp.ge.s32.totalorder %s34, 2
      %s36 = scalar_select %p35, 0, %s34
      %s37 = ssub.s32 %s24, %s36
      %s38 = ssub.s32 %s25, %s32
      %s39 = sor.u32 %s37, %s38
      %p40 = scmp.eq.s32.totalorder %s39, 0
      %s42 = sadd.s32 %s41, 1
      %s43 = scalar_select %p40, %s41, %s42
      %p46 = pneg %p40
      %p47 = scmp.eq.s32.totalorder %s17, 1
      %p48 = por %p46, %p47
      %p49 = scmp.ne.s32.totalorder %s41, %s44
      %p50 = scmp.eq.s32.totalorder %s17, 0
      %p51 = por %p49, %p50
      %p52 = scmp.ne.s32.totalorder %s41, %s44
      %p53 = scmp.eq.s32.totalorder %s22, 1
      %p54 = por %p52, %p53
      %p55 = scmp.ne.s32.totalorder %s44, %s45
      %p56 = scmp.eq.s32.totalorder %s22, 0
      %p57 = por %p55, %p56
      %p58 = scmp.ne.s32.totalorder %s44, %s45
      %p59 = scmp.eq.s32.totalorder %s23, 1
      %p60 = por %p58, %p59
      %p62 = scmp.ne.s32.totalorder %s45, %s61
      %p63 = scmp.eq.s32.totalorder %s23, 0
      %p64 = por %p62, %p63
      %s66 = sadd.s32 %s65, 1
      %p69 = scmp.eq.s32.totalorder %s17, 1
      %p70 = scmp.ne.s32.totalorder %s65, %s67
      %p71 = scmp.eq.s32.totalorder %s17, 0
      %p72 = por %p70, %p71
      %p73 = scmp.ne.s32.totalorder %s65, %s67
      %p74 = scmp.eq.s32.totalorder %s22, 1
      %p75 = por %p73, %p74
      %p76 = scmp.ne.s32.totalorder %s67, %s68
      %p77 = scmp.eq.s32.totalorder %s22, 0
      %p78 = por %p76, %p77
      %p79 = scmp.ne.s32.totalorder %s67, %s68
      %p80 = scmp.eq.s32.totalorder %s23, 1
      %p81 = por %p79, %p80
      %p83 = scmp.ne.s32.totalorder %s68, %s82
      %p84 = scmp.eq.s32.totalorder %s23, 0
      %p85 = por %p83, %p84
      %s87 = sadd.s32 %s86, 1
      %p90 = scmp.eq.s32.totalorder %s17, 1
      %p91 = scmp.ne.s32.totalorder %s86, %s88
      %p92 = scmp.eq.s32.totalorder %s17, 0
      %p93 = por %p91, %p92
      %p94 = scmp.ne.s32.totalorder %s86, %s88
      %p95 = scmp.eq.s32.totalorder %s22, 1
      %p96 = por %p94, %p95
      %p97 = scmp.ne.s32.totalorder %s88, %s89
      %p98 = scmp.eq.s32.totalorder %s22, 0
      %p99 = por %p97, %p98
      %p100 = scmp.ne.s32.totalorder %s88, %s89
      %p101 = scmp.eq.s32.totalorder %s23, 1
      %p102 = por %p100, %p101
      %p104 = scmp.ne.s32.totalorder %s89, %s103
      %p105 = scmp.eq.s32.totalorder %s23, 0
      %p106 = por %p104, %p105
      %s107 = ssub.s32 %s24, %s36
      %s108 = ssub.s32 %s25, %s32
      %s109 = sor.u32 %s107, %s108
      %p110 = scmp.eq.s32.totalorder %s109, 0
      %s112 = sadd.s32 %s111, 1
      %s113 = scalar_select %p110, %s111, %s112
      %p116 = pneg %p110
      %p117 = scmp.eq.s32.totalorder %s17, 1
      %p118 = por %p116, %p117
      %p119 = scmp.ne.s32.totalorder %s111, %s114
      %p120 = scmp.eq.s32.totalorder %s17, 0
      %p121 = por %p119, %p120
      %p122 = scmp.ne.s32.totalorder %s111, %s114
      %p123 = scmp.eq.s32.totalorder %s22, 1
      %p124 = por %p122, %p123
      %p125 = scmp.ne.s32.totalorder %s114, %s115
      %p126 = scmp.eq.s32.totalorder %s22, 0
      %p127 = por %p125, %p126
      %p128 = scmp.ne.s32.totalorder %s114, %s115
      %p129 = scmp.eq.s32.totalorder %s23, 1
      %p130 = por %p128, %p129
      %p132 = scmp.ne.s32.totalorder %s115, %s131
      %p133 = scmp.eq.s32.totalorder %s23, 0
      %p134 = por %p132, %p133
      %p135 = scmp.le.s32.totalorder 1, %s17
      %p136 = scmp.lt.s32.totalorder %s17, 3
      %p137 = pnand %p135, %p136
      %p138 = pneg %p137
      // Predicated region
      $region9: #{tpu_custom_call.1} parent=5 // pred_check
        _
      $region10: #{tpu_custom_call.1} parent=5 // pred_check_branch
        %140 = sbr.rel (%p137) target = $region12
      $region11: #{tpu_custom_call.1} parent=5 // pred_region
        %s141 = ssub.s32 %s17, 1
        // Predicated region
        $region13: #{tpu_custom_call.1} parent=11 // pred_check
          %p142 = pneg %p78
        $region14: #{tpu_custom_call.1} parent=11 // pred_check_branch
          %144 = sbr.rel (%p142) target = $region16
        $region15: #{tpu_custom_call.1} parent=11 // pred_region
          _
        $region16: #{tpu_custom_call.1} parent=11 // pred_fallthru
          _
        // Predicated region
        $region17: #{tpu_custom_call.1} parent=11 // pred_check
          %p145 = pneg %p99
        $region18: #{tpu_custom_call.1} parent=11 // pred_check_branch
          %147 = sbr.rel (%p145) target = $region20
        $region19: #{tpu_custom_call.1} parent=11 // pred_region
          _
        $region20: #{tpu_custom_call.1} parent=11 // pred_fallthru
          _
      $region12: #{tpu_custom_call.1} parent=5 // pred_fallthru
        _
      %p148 = scmp.lt.s32.totalorder %s17, 2
      // Predicated region
      $region21: #{tpu_custom_call.1} parent=5 // pred_check
        %p149 = pneg %p148
      $region22: #{tpu_custom_call.1} parent=5 // pred_check_branch
        %151 = sbr.rel (%p149) target = $region24
      $region23: #{tpu_custom_call.1} parent=5 // pred_region
        // Predicated region
        $region25: #{tpu_custom_call.1} parent=23 // pred_check
          %p152 = pneg %p51
        $region26: #{tpu_custom_call.1} parent=23 // pred_check_branch
          %154 = sbr.rel (%p152) target = $region28
        $region27: #{tpu_custom_call.1} parent=23 // pred_region
          %s155 = sand.u32 %s41, 1
          %s156 = scalar_lea.sflag [#allocation4], %s155
          %s157 = sand.u32 %s41, 1
          %s158 = smul.addr %s157, 8
          %s159 = scalar_lea.vmem [#allocation3], %s158
          %s160 = smul.u32 2, %s25
          %s162 = ssub.s32 128, 128
          %163 = vsyncadd %s156, %s162
          %s164 = smul.addr %s24, 2
          %s165 = sadd.s32 %s160, %s164
          %s166 = smul.addr %s165, 64
          %s167 = scalar_lea.hbm %s0, %s166
          %s169 = sshll.u32 %s159, 4
          %s170 = int_to_ptr.vmem [resolvable:$true] %s169
          %172 = dma.hbm_to_vmem [thread:$0]  %s167, 128, %s170, %s156
        $region28: #{tpu_custom_call.1} parent=23 // pred_fallthru
          _
      $region24: #{tpu_custom_call.1} parent=5 // pred_fallthru
        _
      %p173 = scmp.le.s32.totalorder 1, %s17
      %p174 = scmp.lt.s32.totalorder %s17, 3
      %p175 = pnand %p173, %p174
      %p176 = pneg %p175
      // Predicated region
      $region29: #{tpu_custom_call.1} parent=5 // pred_check
        _
      $region30: #{tpu_custom_call.1} parent=5 // pred_check_branch
        %178 = sbr.rel (%p175) target = $region32
      $region31: #{tpu_custom_call.1} parent=5 // pred_region
        %s179 = ssub.s32 %s17, 1
        %s180 = sand.u32 %s44, 1
        %s181 = scalar_lea.sflag [#allocation4], %s180
        %s182 = sand.u32 %s44, 1
        %s183 = smul.addr %s182, 8
        %s184 = scalar_lea.vmem [#allocation3], %s183
        // Predicated region
        $region33: #{tpu_custom_call.1} parent=31 // pred_check
          %p185 = pneg %p57
        $region34: #{tpu_custom_call.1} parent=31 // pred_check_branch
          %187 = sbr.rel (%p185) target = $region36
        $region35: #{tpu_custom_call.1} parent=31 // pred_region
          %188 = dma.done %s181, 128
        $region36: #{tpu_custom_call.1} parent=31 // pred_fallthru
          _
        %s189 = sand.u32 %s44, 1
        %s190 = scalar_lea.sflag [#allocation4], %s189
        %s191 = sand.u32 %s44, 1
        %s192 = smul.addr %s191, 8
        %s193 = scalar_lea.vmem [#allocation3], %s192
        %p194 = pneg %p57
        %p195 = pneg %p54
        %p196 = pneg %p78
        %p197 = pneg %p75
        %p198 = pneg %p99
        %p199 = pneg %p96
        %p200 = pneg %p127
        %p201 = pneg %p124
        %s202 = sand.u32 %s114, 1
        %s203 = scalar_lea.sflag [#allocation5], %s202
        %s204 = sand.u32 %s114, 1
        %s205 = smul.addr %s204, 2
        %s206 = scalar_lea.vmem [#allocation6], %s205
        %s207 = smul.u32 2, %s27
        %s208 = smul.u32 2, %s27
        %v209 = vld [vmem:[%s1] sm:$0x1]
        %v210 = vld [vmem:[%s184] sm:$0xff]
        %v211 = vld [vmem:[#allocation2] sm:$0x1]
        %213 = vset.pattern.permute.xlu0 0
        %214 = vperm.xlu0 %213, %v211
        %v215 = vpop.permute.xlu0 %214
        %v217 = vlaneseq
        %v218 = vshrl.u32 %v217, 7
        %v219 = vsub.s32 0, %v218
        %v220 = vrot.slane %v215, %v219
        %v222 = vcombine.high %v210, %v210
        %vm223 = vcmask 31744
        %v225 = vsel %vm223, %v209, 0
        %vm227 = vcmask 1043456
        %v228 = vsel %vm227, %v210, 0
        %v230 = vsel %vm227, %v222, 0
        %232 = vmatprep.subr.mxu0 %v230
        %233 = vmatpush1.msra.mxu0 %v228
        %234 = vmatprep.subr.mxu0 0.0
        %235 = vmatpush1.msra.mxu0 0.0
        %236 = vmatprep.subr.mxu0 0.0
        %237 = vmatpush1.msra.mxu0 0.0
        %238 = vmatprep.subr.mxu0 0.0
        %239 = vmatpush1.msra.mxu0 0.0
        %240 = vmatprep.subr.mxu0 0.0
        %241 = vmatpush1.msra.mxu0 0.0
        %242 = vmatprep.subr.mxu0 0.0
        %243 = vmatpush1.msra.mxu0 0.0
        %244 = vmatprep.subr.mxu0 0.0
        %245 = vmatpush1.msra.mxu0 0.0
        %246 = vmatprep.subr.mxu0 0.0
        %247 = vmatpush1.msra.mxu0 0.0
        %248 = vmatprep.subr.mxu0 0.0
        %249 = vmatpush1.msra.mxu0 0.0
        %250 = vmatprep.subr.mxu0 0.0
        %251 = vmatpush1.msra.mxu0 0.0
        %252 = vmatprep.subr.mxu0 0.0
        %253 = vmatpush1.msra.mxu0 0.0
        %254 = vmatprep.subr.mxu0 0.0
        %255 = vmatpush1.msra.mxu0 0.0
        %256 = vmatprep.subr.mxu0 0.0
        %257 = vmatpush1.msra.mxu0 0.0
        %258 = vmatprep.subr.mxu0 0.0
        %259 = vmatpush1.msra.mxu0 0.0
        %260 = vmatprep.subr.mxu0 0.0
        %261 = vmatpush1.msra.mxu0 0.0
        %262 = vmatprep.subr.mxu0 0.0
        %263 = vmatpush1.msra.mxu0 0.0
        %264 = vmatprep.subr.mxu0 0.0
        %265 = vmatpush1.msra.mxu0 0.0
        %266 = vmatprep.subr.mxu0 0.0
        %267 = vmatpush1.msra.mxu0 0.0
        %268 = vmatprep.subr.mxu0 0.0
        %269 = vmatpush1.msra.mxu0 0.0
        %270 = vmatprep.subr.mxu0 0.0
        %271 = vmatpush1.msra.mxu0 0.0
        %272 = vmatprep.subr.mxu0 0.0
        %273 = vmatpush1.msra.mxu0 0.0
        %274 = vmatprep.subr.mxu0 0.0
        %275 = vmatpush1.msra.mxu0 0.0
        %276 = vmatprep.subr.mxu0 0.0
        %277 = vmatpush1.msra.mxu0 0.0
        %278 = vmatprep.subr.mxu0 0.0
        %279 = vmatpush1.msra.mxu0 0.0
        %280 = vmatprep.subr.mxu0 0.0
        %281 = vmatpush1.msra.mxu0 0.0
        %282 = vmatprep.subr.mxu0 0.0
        %283 = vmatpush1.msra.mxu0 0.0
        %284 = vmatprep.subr.mxu0 0.0
        %285 = vmatpush1.msra.mxu0 0.0
        %286 = vmatprep.subr.mxu0 0.0
        %287 = vmatpush1.msra.mxu0 0.0
        %288 = vmatprep.subr.mxu0 0.0
        %289 = vmatpush1.msra.mxu0 0.0
        %290 = vmatprep.subr.mxu0 0.0
        %291 = vmatpush1.msra.mxu0 0.0
        %292 = vmatprep.subr.mxu0 0.0
        %293 = vmatpush1.msra.mxu0 0.0
        %294 = vmatprep.subr.mxu0 0.0
        %295 = vmatpush1.msra.mxu0 0.0
        %296 = vmatprep.mubr.f32.mxu0 0.0
        %297 = vmatmul.mubr.f32.gmra.mrb[0].mxu0 %v225
        %v298 = vpop.f32.mrb[0].mxu0
        %v299 = vadd.f32 %v220, %v298
        %v300 = vpop.f32.mrb[0].mxu0
        %v301 = vadd.f32 %v220, %v300
        %302 = vdwg.mxu0
        %v305 = vcombine.low %v299, %v301
        %v307 = vunpack.c.l.s4 1966171168
        %v308 = vunpack.c.0.s8 %v307
        %v309 = vlaneseq
        %v310 = vshrl.u32 %v309, 7
        %v311 = vsub.s32 %v308, %v310
        %v312 = vrot.slane %v305, %v311
        %v314 = vunpack.c.l.s4 1966171168
        %v315 = vunpack.c.0.s8 %v314
        %v316 = vlaneseq
        %v317 = vshrl.u32 %v316, 7
        %v318 = vsub.s32 %v315, %v317
        %v319 = vrot.slane %v312, %v318
        %v321 = vlaneseq
        %vm322 = vcmp.ge.s32.totalorder %v321, 0
        %vm323 = vcmp.lt.s32.totalorder %v321, 256
        %vm324 = vmand %vm322, %vm323
        %325 = vst.msk [vmem:[%s206] sm:$0x3] %vm324, %v319
        %s326 = sand.u32 %s114, 1
        %s327 = scalar_lea.sflag [#allocation5], %s326
        %s328 = sand.u32 %s114, 1
        %s329 = smul.addr %s328, 2
        %s330 = scalar_lea.vmem [#allocation6], %s329
        // Predicated region
        $region37: #{tpu_custom_call.1} parent=31 // pred_check
          %p331 = pneg %p124
        $region38: #{tpu_custom_call.1} parent=31 // pred_check_branch
          %333 = sbr.rel (%p331) target = $region40
        $region39: #{tpu_custom_call.1} parent=31 // pred_region
          %s334 = smul.u32 2, %s27
          %s336 = ssub.s32 32, 32
          %337 = vsyncadd %s327, %s336
          %s338 = smul.addr %s26, 2
          %s339 = sadd.s32 %s334, %s338
          %s340 = smul.addr %s339, 16
          %s341 = scalar_lea.hbm %s3, %s340
          %s343 = sshll.u32 %s330, 4
          %s344 = int_to_ptr.vmem [resolvable:$true] %s343
          %346 = dma.vmem_to_hbm [thread:$0]  %s344, 32, %s341, %s327
        $region40: #{tpu_custom_call.1} parent=31 // pred_fallthru
          _
      $region32: #{tpu_custom_call.1} parent=5 // pred_fallthru
        _
      %p347 = scmp.le.s32.totalorder 2, %s17
      // Predicated region
      $region41: #{tpu_custom_call.1} parent=5 // pred_check
        %p348 = pneg %p347
      $region42: #{tpu_custom_call.1} parent=5 // pred_check_branch
        %350 = sbr.rel (%p348) target = $region44
      $region43: #{tpu_custom_call.1} parent=5 // pred_region
        %s351 = ssub.s32 %s17, 2
        // Predicated region
        $region45: #{tpu_custom_call.1} parent=43 // pred_check
          %p352 = pneg %p130
        $region46: #{tpu_custom_call.1} parent=43 // pred_check_branch
          %354 = sbr.rel (%p352) target = $region48
        $region47: #{tpu_custom_call.1} parent=43 // pred_region
          %s355 = sand.u32 %s115, 1
          %s356 = scalar_lea.sflag [#allocation5], %s355
          %s357 = sand.u32 %s115, 1
          %s358 = smul.addr %s357, 2
          %s359 = scalar_lea.vmem [#allocation6], %s358
          %360 = dma.done %s356, 32
        $region48: #{tpu_custom_call.1} parent=43 // pred_fallthru
          _
      $region44: #{tpu_custom_call.1} parent=5 // pred_fallthru
        _
    $region6: #{tpu_custom_call.1} parent=1 // loop_footer
      %s21 = sadd.s32 1, %s17
    $region7: #{tpu_custom_call.1} parent=1 // loop_footer_branch
      %16 = sbr.rel target = $region3
    $region8: #{tpu_custom_call.1} parent=1 // loop_exit
      _
    %361 = vsyncpa [#allocation4], 1
    %s362 = scalar_lea.sflag [#allocation4], 1
    %363 = vsyncpa %s362, 1
    %364 = vsyncpa [#allocation5], 1
    %s365 = scalar_lea.sflag [#allocation5], 1
    %366 = vsyncpa %s365, 1

</llo_original>
